<compile_context>
chip_gen: v7x
topology: tpu7x:2x2x1
jax: 0.10.0
libtpu: 0.0.40
codegen_flags: <defaults>
</compile_context>

<pallas_src>
import functools

import jax
import jax.numpy as jnp
import numpy as np
from jax.experimental import pallas as pl
from jax.experimental.pallas import tpu as pltpu


def _round_up(x, m):
    return ((x + m - 1) // m) * m


def _rudy_kernel(bin_x_ref, bin_y_ref, netx_ref, nety_ref, out_ref,
                 acc_ref, rhs_ref, *, bin_size_x, bin_size_y, nby_pad):
    k = pl.program_id(1)

    @pl.when(k == 0)
    def _():
        acc_ref[...] = jnp.zeros_like(acc_ref)

    # --- LHS: x-overlap of every net bbox with every x-bin -> (tbx, NET_TILE) ---
    # netx_ref: (8, NET_TILE), rows [x_min, x_max, 0...], nets on the LANE axis.
    x_min = netx_ref[0:1, :]                    # (1, NET_TILE)
    x_max = netx_ref[1:2, :]
    bin_xl = bin_x_ref[...]                     # (tbx, 1), grid-invariant resident input
    ov_x = jnp.maximum(
        jnp.minimum(x_max, bin_xl + bin_size_x) - jnp.maximum(x_min, bin_xl), 0.0)

    # --- RHS in canonical [K, N]: nets on SUBLANES, y-bins on LANES ---
    # nety_ref: (NET_TILE, 8), cols [y_min, y_max, w_h, w_v, 0...].
    y_min = nety_ref[:, 0:1]                    # (NET_TILE, 1)
    y_max = nety_ref[:, 1:2]
    w_h = nety_ref[:, 2:3]                      # wt * inv_h / (y_span + eps)
    w_v = nety_ref[:, 3:4]                      # wt * inv_v / (x_span + eps)
    bin_yl = bin_y_ref[...]                     # (1, nby_pad)
    ov_y = jnp.maximum(
        jnp.minimum(y_max, bin_yl + bin_size_y) - jnp.maximum(y_min, bin_yl), 0.0)
    # Write the two weighted halves straight into the RHS scratch (no concat, no relayout).
    rhs_ref[:, :nby_pad] = ov_y * w_h
    rhs_ref[:, nby_pad:] = ov_y * w_v

    # Single fused MXU matmul: (tbx, NT) x (NT, 2*nby_pad) -> (tbx, 2*nby_pad), f32 acc.
    # TODO(synk): if profiling shows the MXU (not VPU/vst) is the binding slot on v6e/v7x,
    # switch to a compensated bf16x2 split here (plain bf16 misses the 1e-4 tolerance).
    acc_ref[...] += jax.lax.dot_general(
        ov_x, rhs_ref[...], (((1,), (0,)), ((), ())),
        preferred_element_type=jnp.float32)

    @pl.when(k == pl.num_programs(1) - 1)
    def _():
        acc = acc_ref[...]
        out_ref[...] = jnp.maximum(jnp.abs(acc[:, :nby_pad]),
                                   jnp.abs(acc[:, nby_pad:]))


def _choose_net_tile(tbx, nby_pad, num_nets, budget_bytes):
    nt = 2048
    while nt > 256:
        need = 4 * (tbx * 2 * nby_pad          # accumulator scratch
                    + nt * 2 * nby_pad         # rhs scratch
                    + tbx * nt                 # ov_x intermediate
                    + nt * nby_pad             # ov_y intermediate
                    + 4 * 128 * nt             # double-buffered net tiles (lane-padded)
                    + 2 * tbx * nby_pad)       # output block
        if need <= budget_bytes:
            break
        nt //= 2
    # Don't pad tiny designs up to a huge tile.
    nt = max(128, min(nt, _round_up(max(num_nets, 1), 128)))
    return nt


def rudy_forward(pin_pos, netpin_start, flat_netpin, net_weights, *,
                 xl, xh, yl, yh, num_bins_x, num_bins_y,
                 unit_horizontal_capacity, unit_vertical_capacity):
    pin_pos = pin_pos.astype(jnp.float32)
    num_nets = int(net_weights.shape[0])
    num_pins = pin_pos.shape[0] // 2
    pin_x = pin_pos[:num_pins]
    pin_y = pin_pos[num_pins:]

    bin_size_x = (xh - xl) / num_bins_x
    bin_size_y = (yh - yl) / num_bins_y
    bin_area = bin_size_x * bin_size_y
    inv_h = 1.0 / (bin_area * unit_horizontal_capacity)
    inv_v = 1.0 / (bin_area * unit_vertical_capacity)

    # --- glue: per-net bounding boxes (gather + segment reductions) ---
    # TODO(synk): for 1e6+ pin designs this XLA gather/segment-reduce glue can dominate
    # wall clock; move it into a scalar-prefetch Pallas pass (or cache bboxes across
    # placement iterations) if profiling shows it is the bottleneck.
    counts = netpin_start[1:] - netpin_start[:-1]
    P = int(flat_netpin.shape[0])
    net_ids = jnp.repeat(jnp.arange(num_nets, dtype=jnp.int32), counts,
                         total_repeat_length=P)
    px = pin_x[flat_netpin]
    py = pin_y[flat_netpin]
    x_min = jax.ops.segment_min(px, net_ids, num_segments=num_nets, indices_are_sorted=True)
    x_max = jax.ops.segment_max(px, net_ids, num_segments=num_nets, indices_are_sorted=True)
    y_min = jax.ops.segment_min(py, net_ids, num_segments=num_nets, indices_are_sorted=True)
    y_max = jax.ops.segment_max(py, net_ids, num_segments=num_nets, indices_are_sorted=True)

    valid = counts > 0
    zf = jnp.zeros_like(x_min)
    x_min = jnp.where(valid, x_min, zf)
    x_max = jnp.where(valid, x_max, zf)
    y_min = jnp.where(valid, y_min, zf)
    y_max = jnp.where(valid, y_max, zf)
    wt = jnp.where(valid, net_weights.astype(jnp.float32), 0.0)

    eps = jnp.float32(np.finfo(np.float32).eps)
    # Fold the capacity scaling into the per-net weights (drops the epilogue multiplies).
    w_h = wt * jnp.float32(inv_h) / (y_max - y_min + eps)
    w_v = wt * jnp.float32(inv_v) / (x_max - x_min + eps)

    # --- tile selection ---
    nby_pad = _round_up(num_bins_y, 128)

    # One x-tile per TensorCore: 1 on v5e/v6e (single TC), 2 on v7x (dual TC, "parallel"
    # axis 0 shards across cores). Grow the tile count only if the per-tile accumulator
    # would blow the VMEM budget.
    try:
        kind = jax.devices()[0].device_kind.lower()
    except Exception:  # pragma: no cover
        kind = ""
    n_tc = 2 if ("v7" in kind or "7x" in kind) else 1
    acc_cap_bytes = 16 << 20
    n_xtiles = n_tc
    while True:
        tbx = _round_up(max(1, -(-num_bins_x // n_xtiles)), 8)
        if 4 * tbx * 2 * nby_pad <= acc_cap_bytes or tbx == 8:
            break
        n_xtiles *= 2
    nbx_pad = tbx * n_xtiles

    net_tile = _choose_net_tile(tbx, nby_pad, num_nets, budget_bytes=40 << 20)
    n_pad = _round_up(max(num_nets, 1), net_tile)
    pad = n_pad - num_nets

    def padz(a):
        return jnp.pad(a.astype(jnp.float32), (0, pad))

    zeros = jnp.zeros((n_pad,), jnp.float32)
    # Lane-major tile for the x-overlap (nets on lanes).
    netx = jnp.stack([padz(x_min), padz(x_max)] + [zeros] * 6, axis=0)        # (8, n_pad)
    # Sublane-major tile for the y-overlap / weights (nets on sublanes -> canonical [K,N] RHS).
    nety = jnp.stack([padz(y_min), padz(y_max), padz(w_h), padz(w_v)]
                     + [zeros] * 4, axis=1)                                   # (n_pad, 8)

    # Grid-invariant bin lower edges, precomputed once and kept resident in VMEM.
    bin_x_lo = (xl + jnp.arange(nbx_pad, dtype=jnp.float32)
                * jnp.float32(bin_size_x)).reshape(nbx_pad, 1)
    bin_y_lo = (yl + jnp.arange(nby_pad, dtype=jnp.float32)
                * jnp.float32(bin_size_y)).reshape(1, nby_pad)

    kernel = functools.partial(
        _rudy_kernel,
        bin_size_x=float(bin_size_x), bin_size_y=float(bin_size_y),
        nby_pad=int(nby_pad),
    )

    # Scoped-VMEM budget (f32 bytes), 2x headroom, clamped below v7x's 64 MiB physical.
    vmem_est = 4 * (
        tbx * 2 * nby_pad             # accumulator scratch
        + net_tile * 2 * nby_pad      # rhs scratch
        + tbx * net_tile              # ov_x intermediate
        + net_tile * nby_pad          # ov_y intermediate
        + 2 * 8 * net_tile            # double-buffered netx tile
        + 2 * 128 * net_tile          # double-buffered nety tile (lane-padded)
        + 2 * tbx * nby_pad           # output block
        + 2 * (128 * tbx + 8 * nby_pad)  # resident bin-edge inputs (tile-padded)
    )
    vmem_limit = int(min(max(2 * vmem_est, 16 << 20), 48 << 20))

    out_padded = pl.pallas_call(
        kernel,
        out_shape=jax.ShapeDtypeStruct((nbx_pad, nby_pad), jnp.float32),
        grid_spec=pltpu.PrefetchScalarGridSpec(
            num_scalar_prefetch=0,
            grid=(n_xtiles, n_pad // net_tile),
            in_specs=[
                pl.BlockSpec((tbx, 1), lambda bx, k: (bx, 0)),        # bin x lower edges
                pl.BlockSpec((1, nby_pad), lambda bx, k: (0, 0)),     # bin y lower edges
                pl.BlockSpec((8, net_tile), lambda bx, k: (0, k)),    # net tile, nets on lanes
                pl.BlockSpec((net_tile, 8), lambda bx, k: (k, 0)),    # net tile, nets on sublanes
            ],
            out_specs=pl.BlockSpec((tbx, nby_pad), lambda bx, k: (bx, 0)),
            scratch_shapes=[
                pltpu.VMEM((tbx, 2 * nby_pad), jnp.float32),          # h|v accumulator
                pltpu.VMEM((net_tile, 2 * nby_pad), jnp.float32),     # fused [K,N] RHS
            ],
        ),
        compiler_params=pltpu.CompilerParams(
            dimension_semantics=("parallel", "arbitrary"),
            vmem_limit_bytes=vmem_limit,
        ),
    )(bin_x_lo, bin_y_lo, netx, nety)

    return out_padded[:num_bins_x, :num_bins_y]


def _rudy_reference_numpy(pin_pos, netpin_start, flat_netpin, net_weights,
                          xl, xh, yl, yh, nbx, nby, uhc, uvc):
    pin_pos = np.asarray(pin_pos, np.float64)
    num_pins = pin_pos.shape[0] // 2
    px, py = pin_pos[:num_pins], pin_pos[num_pins:]
    netpin_start = np.asarray(netpin_start)
    flat_netpin = np.asarray(flat_netpin)
    net_weights = np.asarray(net_weights, np.float64)
    bsx = (xh - xl) / nbx
    bsy = (yh - yl) / nby
    eps = float(np.finfo(np.float32).eps)
    h = np.zeros((nbx, nby))
    v = np.zeros((nbx, nby))
    bin_xl = xl + np.arange(nbx) * bsx
    bin_yl = yl + np.arange(nby) * bsy
    for i in range(net_weights.shape[0]):
        s, e = int(netpin_start[i]), int(netpin_start[i + 1])
        if e <= s:
            continue
        pins = flat_netpin[s:e]
        x_min, x_max = px[pins].min(), px[pins].max()
        y_min, y_max = py[pins].min(), py[pins].max()
        wt = net_weights[i]
        ovx = np.maximum(np.minimum(x_max, bin_xl + bsx) - np.maximum(x_min, bin_xl), 0.0)
        ovy = np.maximum(np.minimum(y_max, bin_yl + bsy) - np.maximum(y_min, bin_yl), 0.0)
        ov = np.outer(ovx, ovy) * wt
        h += ov / (y_max - y_min + eps)
        v += ov / (x_max - x_min + eps)
    bin_area = bsx * bsy
    h *= 1.0 / (bin_area * uhc)
    v *= 1.0 / (bin_area * uvc)
    return np.maximum(np.abs(h), np.abs(v))


if __name__ == "__main__":
    key = jax.random.PRNGKey(0)
    k_pinx, k_piny, k_fnp, k_w = jax.random.split(key, 4)

    # problem setup (deterministic, small)
    num_pins = 64
    num_nets = 200
    xl, xh, yl, yh = 0.0, 32.0, 0.0, 32.0
    num_bins_x, num_bins_y = 16, 16
    unit_h_cap, unit_v_cap = 1.5, 2.0

    # net degrees 2..6, deterministic pattern -> total flat pins = 800
    counts_np = 2 + (np.arange(num_nets) % 5)
    P = int(counts_np.sum())
    netpin_start = jnp.asarray(np.concatenate([[0], np.cumsum(counts_np)]), jnp.int32)
    flat_netpin = jax.random.randint(k_fnp, (P,), 0, num_pins, dtype=jnp.int32)
    net_weights = jax.random.uniform(k_w, (num_nets,), jnp.float32, 0.5, 1.5)

    pin_x = jax.random.uniform(k_pinx, (num_pins,), jnp.float32, xl, xh)
    pin_y = jax.random.uniform(k_piny, (num_pins,), jnp.float32, yl, yh)
    pin_pos = jnp.concatenate([pin_x, pin_y])  # f32[2*num_pins], x then y

    out = rudy_forward(pin_pos, netpin_start, flat_netpin, net_weights,
                       xl=xl, xh=xh, yl=yl, yh=yh,
                       num_bins_x=num_bins_x, num_bins_y=num_bins_y,
                       unit_horizontal_capacity=unit_h_cap,
                       unit_vertical_capacity=unit_v_cap)
    out = jax.block_until_ready(out)

    ref = _rudy_reference_numpy(pin_pos, netpin_start, flat_netpin, net_weights,
                                xl, xh, yl, yh, num_bins_x, num_bins_y,
                                unit_h_cap, unit_v_cap)
    np.testing.assert_allclose(np.asarray(out), ref, rtol=1e-4, atol=1e-4)
    print("KERNEL_OK")
</pallas_src>

<mosaic_0001>
module attributes {stable_mosaic.version = 11 : i64} {
  func.func @_rudy_kernel(%arg0: i32, %arg1: i32, %arg2: memref<16x1xf32, #tpu.memory_space<vmem>>, %arg3: memref<1x128xf32, #tpu.memory_space<vmem>>, %arg4: memref<8x256xf32, #tpu.memory_space<vmem>>, %arg5: memref<256x8xf32, #tpu.memory_space<vmem>>, %arg6: memref<16x128xf32, #tpu.memory_space<vmem>>, %arg7: memref<16x256xf32, #tpu.memory_space<vmem>>, %arg8: memref<256x256xf32, #tpu.memory_space<vmem>>) attributes {dimension_semantics = [#tpu.dimension_semantics<parallel>, #tpu.dimension_semantics<arbitrary>], iteration_bounds = array<i64: 1, 1>, scalar_prefetch = 0 : i64, scratch_operands = 2 : i64, tpu.core_type = #tpu.core_type<tc>, window_params = [{transform_indices = @transform_0, window_bounds = array<i64: 16, 1>}, {pipeline_mode = #tpu.pipeline_mode<synchronous>, transform_indices = @transform_1, window_bounds = array<i64: 1, 128>}, {transform_indices = @transform_2, window_bounds = array<i64: 8, 256>}, {transform_indices = @transform_3, window_bounds = array<i64: 256, 8>}, {transform_indices = @transform_4, window_bounds = array<i64: 16, 128>}]} {
    %c0_i32 = arith.constant 0 : i32
    %0 = arith.cmpi eq, %arg1, %c0_i32 : i32
    %1 = arith.extui %0 : i1 to i32
    %c0_i32_0 = arith.constant 0 : i32
    %2 = arith.cmpi ne, %1, %c0_i32_0 : i32
    scf.if %2 {
      %cst_28 = arith.constant 0.000000e+00 : f32
      %47 = vector.broadcast %cst_28 : f32 to vector<16x256xf32>
      %c0_29 = arith.constant 0 : index
      %c0_30 = arith.constant 0 : index
      %48 = vector.load %arg7[%c0_29, %c0_30] : memref<16x256xf32, #tpu.memory_space<vmem>>, vector<16x256xf32>
      tpu.vector_store %arg7[%c0_29, %c0_30], %47 {strides = array<i32>} : memref<16x256xf32, #tpu.memory_space<vmem>>, vector<16x256xf32>,
    } else {
    }
    %c0 = arith.constant 0 : index
    %c0_1 = arith.constant 0 : index
    %3 = vector.load %arg4[%c0, %c0_1] : memref<8x256xf32, #tpu.memory_space<vmem>>, vector<1x256xf32>
    %c1 = arith.constant 1 : index
    %c0_2 = arith.constant 0 : index
    %4 = vector.load %arg4[%c1, %c0_2] : memref<8x256xf32, #tpu.memory_space<vmem>>, vector<1x256xf32>
    %c0_3 = arith.constant 0 : index
    %c0_4 = arith.constant 0 : index
    %5 = vector.load %arg2[%c0_3, %c0_4] : memref<16x1xf32, #tpu.memory_space<vmem>>, vector<16x1xf32>
    %cst = arith.constant 2.000000e+00 : f32
    %6 = vector.broadcast %cst : f32 to vector<16x1xf32>
    %7 = arith.addf %5, %6 : vector<16x1xf32>
    %8 = vector.broadcast %4 : vector<1x256xf32> to vector<16x256xf32>
    %9 = vector.broadcast %7 : vector<16x1xf32> to vector<16x256xf32>
    %10 = arith.minimumf %8, %9 : vector<16x256xf32>
    %11 = vector.broadcast %3 : vector<1x256xf32> to vector<16x256xf32>
    %12 = vector.broadcast %5 : vector<16x1xf32> to vector<16x256xf32>
    %13 = arith.maximumf %11, %12 : vector<16x256xf32>
    %14 = arith.subf %10, %13 : vector<16x256xf32>
    %cst_5 = arith.constant 0.000000e+00 : f32
    %15 = vector.broadcast %cst_5 : f32 to vector<16x256xf32>
    %16 = arith.maximumf %14, %15 : vector<16x256xf32>
    %c0_6 = arith.constant 0 : index
    %c0_7 = arith.constant 0 : index
    %17 = vector.load %arg5[%c0_6, %c0_7] : memref<256x8xf32, #tpu.memory_space<vmem>>, vector<256x1xf32>
    %c0_8 = arith.constant 0 : index
    %c1_9 = arith.constant 1 : index
    %18 = vector.load %arg5[%c0_8, %c1_9] : memref<256x8xf32, #tpu.memory_space<vmem>>, vector<256x1xf32>
    %c0_10 = arith.constant 0 : index
    %c2 = arith.constant 2 : index
    %19 = vector.load %arg5[%c0_10, %c2] : memref<256x8xf32, #tpu.memory_space<vmem>>, vector<256x1xf32>
    %c0_11 = arith.constant 0 : index
    %c3 = arith.constant 3 : index
    %20 = vector.load %arg5[%c0_11, %c3] : memref<256x8xf32, #tpu.memory_space<vmem>>, vector<256x1xf32>
    %c0_12 = arith.constant 0 : index
    %c0_13 = arith.constant 0 : index
    %21 = vector.load %arg3[%c0_12, %c0_13] : memref<1x128xf32, #tpu.memory_space<vmem>>, vector<1x128xf32>
    %cst_14 = arith.constant 2.000000e+00 : f32
    %22 = vector.broadcast %cst_14 : f32 to vector<1x128xf32>
    %23 = arith.addf %21, %22 : vector<1x128xf32>
    %24 = vector.broadcast %18 : vector<256x1xf32> to vector<256x128xf32>
    %25 = vector.broadcast %23 : vector<1x128xf32> to vector<256x128xf32>
    %26 = arith.minimumf %24, %25 : vector<256x128xf32>
    %27 = vector.broadcast %17 : vector<256x1xf32> to vector<256x128xf32>
    %28 = vector.broadcast %21 : vector<1x128xf32> to vector<256x128xf32>
    %29 = arith.maximumf %27, %28 : vector<256x128xf32>
    %30 = arith.subf %26, %29 : vector<256x128xf32>
    %cst_15 = arith.constant 0.000000e+00 : f32
    %31 = vector.broadcast %cst_15 : f32 to vector<256x128xf32>
    %32 = arith.maximumf %30, %31 : vector<256x128xf32>
    %33 = vector.broadcast %19 : vector<256x1xf32> to vector<256x128xf32>
    %34 = arith.mulf %32, %33 : vector<256x128xf32>
    %c0_16 = arith.constant 0 : index
    %c0_17 = arith.constant 0 : index
    %35 = vector.load %arg8[%c0_16, %c0_17] : memref<256x256xf32, #tpu.memory_space<vmem>>, vector<256x128xf32>
    tpu.vector_store %arg8[%c0_16, %c0_17], %34 {strides = array<i32>} : memref<256x256xf32, #tpu.memory_space<vmem>>, vector<256x128xf32>,
    %36 = vector.broadcast %20 : vector<256x1xf32> to vector<256x128xf32>
    %37 = arith.mulf %32, %36 : vector<256x128xf32>
    %c0_18 = arith.constant 0 : index
    %c128 = arith.constant 128 : index
    %38 = vector.load %arg8[%c0_18, %c128] : memref<256x256xf32, #tpu.memory_space<vmem>>, vector<256x128xf32>
    tpu.vector_store %arg8[%c0_18, %c128], %37 {strides = array<i32>} : memref<256x256xf32, #tpu.memory_space<vmem>>, vector<256x128xf32>,
    %c0_19 = arith.constant 0 : index
    %c0_20 = arith.constant 0 : index
    %39 = vector.load %arg7[%c0_19, %c0_20] : memref<16x256xf32, #tpu.memory_space<vmem>>, vector<16x256xf32>
    %c0_21 = arith.constant 0 : index
    %c0_22 = arith.constant 0 : index
    %40 = vector.load %arg8[%c0_21, %c0_22] : memref<256x256xf32, #tpu.memory_space<vmem>>, vector<256x256xf32>
    %cst_23 = arith.constant dense<0.000000e+00> : vector<16x256xf32>
    %41 = tpu.matmul %16, %40, %cst_23 {dimension_numbers = #tpu.dot_dimension_numbers<[1], [0], [0], [1], [0, 0, 1, 1], [], []>} : vector<16x256xf32>, vector<256x256xf32>, vector<16x256xf32> -> vector<16x256xf32>
    %42 = arith.addf %39, %41 : vector<16x256xf32>
    %c0_24 = arith.constant 0 : index
    %c0_25 = arith.constant 0 : index
    %43 = vector.load %arg7[%c0_24, %c0_25] : memref<16x256xf32, #tpu.memory_space<vmem>>, vector<16x256xf32>
    tpu.vector_store %arg7[%c0_24, %c0_25], %42 {strides = array<i32>} : memref<16x256xf32, #tpu.memory_space<vmem>>, vector<16x256xf32>,
    %c0_i32_26 = arith.constant 0 : i32
    %44 = arith.cmpi eq, %arg1, %c0_i32_26 : i32
    %45 = arith.extui %44 : i1 to i32
    %c0_i32_27 = arith.constant 0 : i32
    %46 = arith.cmpi ne, %45, %c0_i32_27 : i32
    scf.if %46 {
      %c0_28 = arith.constant 0 : index
      %c0_29 = arith.constant 0 : index
      %47 = vector.load %arg7[%c0_28, %c0_29] : memref<16x256xf32, #tpu.memory_space<vmem>>, vector<16x256xf32>
      %48 = vector.extract_strided_slice %47 {offsets = [0, 0], sizes = [16, 128], strides = [1, 1]} : vector<16x256xf32> to vector<16x128xf32>
      %49 = math.absf %48 : vector<16x128xf32>
      %50 = vector.extract_strided_slice %47 {offsets = [0, 128], sizes = [16, 128], strides = [1, 1]} : vector<16x256xf32> to vector<16x128xf32>
      %51 = math.absf %50 : vector<16x128xf32>
      %52 = arith.maximumf %49, %51 : vector<16x128xf32>
      %c0_30 = arith.constant 0 : index
      %c0_31 = arith.constant 0 : index
      %53 = vector.load %arg6[%c0_30, %c0_31] : memref<16x128xf32, #tpu.memory_space<vmem>>, vector<16x128xf32>
      tpu.vector_store %arg6[%c0_30, %c0_31], %52 {strides = array<i32>} : memref<16x128xf32, #tpu.memory_space<vmem>>, vector<16x128xf32>,
    } else {
    }
    return
  }
  func.func @transform_0(%arg0: i32, %arg1: i32) -> (i32, i32) {
    %c0_i32 = arith.constant 0 : i32
    %c0_i32_0 = arith.constant 0 : i32
    return %arg0, %c0_i32 : i32, i32
  }
  func.func @transform_1(%arg0: i32, %arg1: i32) -> (i32, i32) {
    %c0_i32 = arith.constant 0 : i32
    %c0_i32_0 = arith.constant 0 : i32
    %c0_i32_1 = arith.constant 0 : i32
    return %c0_i32, %c0_i32_0 : i32, i32
  }
  func.func @transform_2(%arg0: i32, %arg1: i32) -> (i32, i32) {
    %c0_i32 = arith.constant 0 : i32
    %c0_i32_0 = arith.constant 0 : i32
    return %c0_i32, %arg1 : i32, i32
  }
  func.func @transform_3(%arg0: i32, %arg1: i32) -> (i32, i32) {
    %c0_i32 = arith.constant 0 : i32
    %c0_i32_0 = arith.constant 0 : i32
    return %arg1, %c0_i32 : i32, i32
  }
  func.func @transform_4(%arg0: i32, %arg1: i32) -> (i32, i32) {
    %c0_i32 = arith.constant 0 : i32
    %c0_i32_0 = arith.constant 0 : i32
    return %arg0, %c0_i32 : i32, i32
  }
}

</mosaic_0001>

<llo_original>
// kernel: tpu_custom_call.1
$region0: #{tpu_custom_call.1}
  #allocation0 [shape = 'u32[]', space=smem, size = 0x4, offset = 0x4, fixed_abs, tag = 'smem constant byte address 0x4 - core index']
  #allocation1 [shape = 'u32[144,128]{1,0:T(1,128)}', space=vmem, size = 0x12000, scoped, tag = 'internal scratch']
  #allocation2 [shape = 'f32[16,256]{1,0:T(8,128)}', space=vmem, size = 0x4000, scoped, tag = 'scratch operand']
  #allocation3 [shape = 'f32[256,256]{1,0:T(8,128)}', space=vmem, size = 0x40000, scoped, tag = 'scratch operand']
  %s0 = inlined_call_operand.vmem [shape: f32[16,1], index: 0, kind: input, shape index: {}]
  %s1 = inlined_call_operand.vmem [shape: f32[1,128], index: 1, kind: input, shape index: {}]
  %s2 = inlined_call_operand.vmem [shape: f32[8,256], index: 2, kind: input, shape index: {}]
  %s3 = inlined_call_operand.vmem [shape: f32[256,8], index: 3, kind: input, shape index: {}]
  %s4 = inlined_call_operand.hbm [shape: f32[16,128], index: 4, kind: output, shape index: {}]
  %s5 = sld [smem:[#allocation0]]
  $region34: #{tpu_custom_call.1} parent=0
    _
  %s7 = ssub.s32 1, %s5
  %s8 = scalar_select 0, %s7, %s5
  $region1: #{tpu_custom_call.1} parent=0
    #allocation4 [shape = 'u8[8192]{0}', space=vmem, size = 0x2000, scoped, tag = 'output window, operand 0, single buffered']
    #allocation5 [shape = 's32[1]{0}', space=sflag, size = 0x4, scoped, tag = 'scoped memory for tpu_custom_call.1']
    %9 = vsyncpa [#allocation5], 0
    // Predicated region
    $region2: #{tpu_custom_call.1} parent=1 // pred_check
      _
    $region3: #{tpu_custom_call.1} parent=1 // pred_check_branch
      %11 = sbr.rel (0) target = $region5
    $region4: #{tpu_custom_call.1} parent=1 // pred_region
      _
    $region5: #{tpu_custom_call.1} parent=1 // pred_fallthru
      _
    // Predicated region
    $region6: #{tpu_custom_call.1} parent=1 // pred_check
      _
    $region7: #{tpu_custom_call.1} parent=1 // pred_check_branch
      %13 = sbr.rel (0) target = $region9
    $region8: #{tpu_custom_call.1} parent=1 // pred_region
      _
    $region9: #{tpu_custom_call.1} parent=1 // pred_fallthru
      _
    // Predicated region
    $region10: #{tpu_custom_call.1} parent=1 // pred_check
      _
    $region11: #{tpu_custom_call.1} parent=1 // pred_check_branch
      %15 = sbr.rel (0) target = $region13
    $region12: #{tpu_custom_call.1} parent=1 // pred_region
      _
    $region13: #{tpu_custom_call.1} parent=1 // pred_fallthru
      _
    // Predicated region
    $region14: #{tpu_custom_call.1} parent=1 // pred_check
      _
    $region15: #{tpu_custom_call.1} parent=1 // pred_check_branch
      %17 = sbr.rel (0) target = $region17
    $region16: #{tpu_custom_call.1} parent=1 // pred_region
      _
    $region17: #{tpu_custom_call.1} parent=1 // pred_fallthru
      _
    %p18 = scmp.eq.s32.totalorder 0, 0
    // Predicated region
    $region18: #{tpu_custom_call.1} parent=1 // pred_check
      %p19 = pneg %p18
    $region19: #{tpu_custom_call.1} parent=1 // pred_check_branch
      %21 = sbr.rel (%p19) target = $region21
    $region20: #{tpu_custom_call.1} parent=1 // pred_region
      %22 = vst [vmem:[#allocation2] sm:$0xff] 0.0
      %23 = vst [vmem:[#allocation2 + $0x8] sm:$0xff] 0.0
      %24 = vst [vmem:[#allocation2 + $0x10] sm:$0xff] 0.0
      %25 = vst [vmem:[#allocation2 + $0x18] sm:$0xff] 0.0
    $region21: #{tpu_custom_call.1} parent=1 // pred_fallthru
      _
    %v26 = vld [vmem:[%s2] ss:$8 sm:$0x3]
    %s27 = scalar_lea.vmem %s2, 1
    %v28 = vld [vmem:[%s27] ss:$8 sm:$0x3]
    %v29 = vld [vmem:[%s0] sm:$0xff]
    %v30 = vld [vmem:[%s0 + $0x8] sm:$0xff]
    %v31 = vadd.f32 %v29, 2.0
    %v32 = vadd.f32 %v30, 2.0
    %v34 = vlaneseq
    %v35 = vshrl.u32 %v34, 7
    %v36 = vsub.s32 0, %v35
    %v37 = vrot.slane %v28, %v36
    %v38 = vlaneseq
    %v39 = vshrl.u32 %v38, 7
    %v40 = vsub.s32 1, %v39
    %v41 = vrot.slane %v28, %v40
    %45 = vset.pattern.permute.xlu0 0
    %46 = vperm.xlu0 %45, %v31
    %v47 = vpop.permute.xlu0 %46
    %50 = vset.pattern.permute.xlu0 0
    %51 = vperm.xlu0 %50, %v32
    %v52 = vpop.permute.xlu0 %51
    %v54 = vmin.f32 %v37, %v47
    %v55 = vmin.f32 %v41, %v47
    %v56 = vmin.f32 %v37, %v52
    %v57 = vmin.f32 %v41, %v52
    %v59 = vlaneseq
    %v60 = vshrl.u32 %v59, 7
    %v61 = vsub.s32 0, %v60
    %v62 = vrot.slane %v26, %v61
    %v63 = vlaneseq
    %v64 = vshrl.u32 %v63, 7
    %v65 = vsub.s32 1, %v64
    %v66 = vrot.slane %v26, %v65
    %70 = vset.pattern.permute.xlu0 0
    %71 = vperm.xlu0 %70, %v29
    %v72 = vpop.permute.xlu0 %71
    %75 = vset.pattern.permute.xlu0 0
    %76 = vperm.xlu0 %75, %v30
    %v77 = vpop.permute.xlu0 %76
    %v79 = vmax.f32 %v62, %v72
    %v80 = vmax.f32 %v66, %v72
    %v81 = vmax.f32 %v62, %v77
    %v82 = vmax.f32 %v66, %v77
    %v83 = vsub.f32 %v54, %v79
    %v84 = vsub.f32 %v55, %v80
    %v85 = vsub.f32 %v56, %v81
    %v86 = vsub.f32 %v57, %v82
    %v87 = vmax.f32 %v83, 0.0
    %v88 = vmax.f32 %v84, 0.0
    %v89 = vmax.f32 %v85, 0.0
    %v90 = vmax.f32 %v86, 0.0
    %v91 = vld [vmem:[%s3] sm:$0xff]
    %v92 = vld [vmem:[%s3 + $0x8] sm:$0xff]
    %v93 = vld [vmem:[%s3 + $0x10] sm:$0xff]
    %v94 = vld [vmem:[%s3 + $0x18] sm:$0xff]
    %v95 = vld [vmem:[%s3 + $0x20] sm:$0xff]
    %v96 = vld [vmem:[%s3 + $0x28] sm:$0xff]
    %v97 = vld [vmem:[%s3 + $0x30] sm:$0xff]
    %v98 = vld [vmem:[%s3 + $0x38] sm:$0xff]
    %v99 = vld [vmem:[%s3 + $0x40] sm:$0xff]
    %v100 = vld [vmem:[%s3 + $0x48] sm:$0xff]
    %v101 = vld [vmem:[%s3 + $0x50] sm:$0xff]
    %v102 = vld [vmem:[%s3 + $0x58] sm:$0xff]
    %v103 = vld [vmem:[%s3 + $0x60] sm:$0xff]
    %v104 = vld [vmem:[%s3 + $0x68] sm:$0xff]
    %v105 = vld [vmem:[%s3 + $0x70] sm:$0xff]
    %v106 = vld [vmem:[%s3 + $0x78] sm:$0xff]
    %v107 = vld [vmem:[%s3 + $0x80] sm:$0xff]
    %v108 = vld [vmem:[%s3 + $0x88] sm:$0xff]
    %v109 = vld [vmem:[%s3 + $0x90] sm:$0xff]
    %v110 = vld [vmem:[%s3 + $0x98] sm:$0xff]
    %v111 = vld [vmem:[%s3 + $0xa0] sm:$0xff]
    %v112 = vld [vmem:[%s3 + $0xa8] sm:$0xff]
    %v113 = vld [vmem:[%s3 + $0xb0] sm:$0xff]
    %v114 = vld [vmem:[%s3 + $0xb8] sm:$0xff]
    %v115 = vld [vmem:[%s3 + $0xc0] sm:$0xff]
    %v116 = vld [vmem:[%s3 + $0xc8] sm:$0xff]
    %v117 = vld [vmem:[%s3 + $0xd0] sm:$0xff]
    %v118 = vld [vmem:[%s3 + $0xd8] sm:$0xff]
    %v119 = vld [vmem:[%s3 + $0xe0] sm:$0xff]
    %v120 = vld [vmem:[%s3 + $0xe8] sm:$0xff]
    %v121 = vld [vmem:[%s3 + $0xf0] sm:$0xff]
    %v122 = vld [vmem:[%s3 + $0xf8] sm:$0xff]
    %v123 = vld [vmem:[%s1] sm:$0x1]
    %v124 = vadd.f32 %v123, 2.0
    %126 = vset.pattern.permute.xlu0 1
    %127 = vperm.xlu0 %126, %v91
    %v128 = vpop.permute.xlu0 %127
    %131 = vset.pattern.permute.xlu0 1
    %132 = vperm.xlu0 %131, %v92
    %v133 = vpop.permute.xlu0 %132
    %136 = vset.pattern.permute.xlu0 1
    %137 = vperm.xlu0 %136, %v93
    %v138 = vpop.permute.xlu0 %137
    %141 = vset.pattern.permute.xlu0 1
    %142 = vperm.xlu0 %141, %v94
    %v143 = vpop.permute.xlu0 %142
    %146 = vset.pattern.permute.xlu0 1
    %147 = vperm.xlu0 %146, %v95
    %v148 = vpop.permute.xlu0 %147
    %151 = vset.pattern.permute.xlu0 1
    %152 = vperm.xlu0 %151, %v96
    %v153 = vpop.permute.xlu0 %152
    %156 = vset.pattern.permute.xlu0 1
    %157 = vperm.xlu0 %156, %v97
    %v158 = vpop.permute.xlu0 %157
    %161 = vset.pattern.permute.xlu0 1
    %162 = vperm.xlu0 %161, %v98
    %v163 = vpop.permute.xlu0 %162
    %166 = vset.pattern.permute.xlu0 1
    %167 = vperm.xlu0 %166, %v99
    %v168 = vpop.permute.xlu0 %167
    %171 = vset.pattern.permute.xlu0 1
    %172 = vperm.xlu0 %171, %v100
    %v173 = vpop.permute.xlu0 %172
    %176 = vset.pattern.permute.xlu0 1
    %177 = vperm.xlu0 %176, %v101
    %v178 = vpop.permute.xlu0 %177
    %181 = vset.pattern.permute.xlu0 1
    %182 = vperm.xlu0 %181, %v102
    %v183 = vpop.permute.xlu0 %182
    %186 = vset.pattern.permute.xlu0 1
    %187 = vperm.xlu0 %186, %v103
    %v188 = vpop.permute.xlu0 %187
    %191 = vset.pattern.permute.xlu0 1
    %192 = vperm.xlu0 %191, %v104
    %v193 = vpop.permute.xlu0 %192
    %196 = vset.pattern.permute.xlu0 1
    %197 = vperm.xlu0 %196, %v105
    %v198 = vpop.permute.xlu0 %197
    %201 = vset.pattern.permute.xlu0 1
    %202 = vperm.xlu0 %201, %v106
    %v203 = vpop.permute.xlu0 %202
    %206 = vset.pattern.permute.xlu0 1
    %207 = vperm.xlu0 %206, %v107
    %v208 = vpop.permute.xlu0 %207
    %211 = vset.pattern.permute.xlu0 1
    %212 = vperm.xlu0 %211, %v108
    %v213 = vpop.permute.xlu0 %212
    %216 = vset.pattern.permute.xlu0 1
    %217 = vperm.xlu0 %216, %v109
    %v218 = vpop.permute.xlu0 %217
    %221 = vset.pattern.permute.xlu0 1
    %222 = vperm.xlu0 %221, %v110
    %v223 = vpop.permute.xlu0 %222
    %226 = vset.pattern.permute.xlu0 1
    %227 = vperm.xlu0 %226, %v111
    %v228 = vpop.permute.xlu0 %227
    %231 = vset.pattern.permute.xlu0 1
    %232 = vperm.xlu0 %231, %v112
    %v233 = vpop.permute.xlu0 %232
    %236 = vset.pattern.permute.xlu0 1
    %237 = vperm.xlu0 %236, %v113
    %v238 = vpop.permute.xlu0 %237
    %241 = vset.pattern.permute.xlu0 1
    %242 = vperm.xlu0 %241, %v114
    %v243 = vpop.permute.xlu0 %242
    %246 = vset.pattern.permute.xlu0 1
    %247 = vperm.xlu0 %246, %v115
    %v248 = vpop.permute.xlu0 %247
    %251 = vset.pattern.permute.xlu0 1
    %252 = vperm.xlu0 %251, %v116
    %v253 = vpop.permute.xlu0 %252
    %256 = vset.pattern.permute.xlu0 1
    %257 = vperm.xlu0 %256, %v117
    %v258 = vpop.permute.xlu0 %257
    %261 = vset.pattern.permute.xlu0 1
    %262 = vperm.xlu0 %261, %v118
    %v263 = vpop.permute.xlu0 %262
    %266 = vset.pattern.permute.xlu0 1
    %267 = vperm.xlu0 %266, %v119
    %v268 = vpop.permute.xlu0 %267
    %271 = vset.pattern.permute.xlu0 1
    %272 = vperm.xlu0 %271, %v120
    %v273 = vpop.permute.xlu0 %272
    %276 = vset.pattern.permute.xlu0 1
    %277 = vperm.xlu0 %276, %v121
    %v278 = vpop.permute.xlu0 %277
    %281 = vset.pattern.permute.xlu0 1
    %282 = vperm.xlu0 %281, %v122
    %v283 = vpop.permute.xlu0 %282
    %v286 = vlaneseq
    %v287 = vshrl.u32 %v286, 7
    %v288 = vsub.s32 0, %v287
    %v289 = vrot.slane %v124, %v288
    %v291 = vmin.f32 %v128, %v289
    %v292 = vmin.f32 %v133, %v289
    %v293 = vmin.f32 %v138, %v289
    %v294 = vmin.f32 %v143, %v289
    %v295 = vmin.f32 %v148, %v289
    %v296 = vmin.f32 %v153, %v289
    %v297 = vmin.f32 %v158, %v289
    %v298 = vmin.f32 %v163, %v289
    %v299 = vmin.f32 %v168, %v289
    %v300 = vmin.f32 %v173, %v289
    %v301 = vmin.f32 %v178, %v289
    %v302 = vmin.f32 %v183, %v289
    %v303 = vmin.f32 %v188, %v289
    %v304 = vmin.f32 %v193, %v289
    %v305 = vmin.f32 %v198, %v289
    %v306 = vmin.f32 %v203, %v289
    %v307 = vmin.f32 %v208, %v289
    %v308 = vmin.f32 %v213, %v289
    %v309 = vmin.f32 %v218, %v289
    %v310 = vmin.f32 %v223, %v289
    %v311 = vmin.f32 %v228, %v289
    %v312 = vmin.f32 %v233, %v289
    %v313 = vmin.f32 %v238, %v289
    %v314 = vmin.f32 %v243, %v289
    %v315 = vmin.f32 %v248, %v289
    %v316 = vmin.f32 %v253, %v289
    %v317 = vmin.f32 %v258, %v289
    %v318 = vmin.f32 %v263, %v289
    %v319 = vmin.f32 %v268, %v289
    %v320 = vmin.f32 %v273, %v289
    %v321 = vmin.f32 %v278, %v289
    %v322 = vmin.f32 %v283, %v289
    %323 = vset.pattern.permute.xlu0 0
    %324 = vperm.xlu0 %323, %v91
    %v325 = vpop.permute.xlu0 %324
    %327 = vset.pattern.permute.xlu0 0
    %328 = vperm.xlu0 %327, %v92
    %v329 = vpop.permute.xlu0 %328
    %331 = vset.pattern.permute.xlu0 0
    %332 = vperm.xlu0 %331, %v93
    %v333 = vpop.permute.xlu0 %332
    %335 = vset.pattern.permute.xlu0 0
    %336 = vperm.xlu0 %335, %v94
    %v337 = vpop.permute.xlu0 %336
    %339 = vset.pattern.permute.xlu0 0
    %340 = vperm.xlu0 %339, %v95
    %v341 = vpop.permute.xlu0 %340
    %343 = vset.pattern.permute.xlu0 0
    %344 = vperm.xlu0 %343, %v96
    %v345 = vpop.permute.xlu0 %344
    %347 = vset.pattern.permute.xlu0 0
    %348 = vperm.xlu0 %347, %v97
    %v349 = vpop.permute.xlu0 %348
    %351 = vset.pattern.permute.xlu0 0
    %352 = vperm.xlu0 %351, %v98
    %v353 = vpop.permute.xlu0 %352
    %355 = vset.pattern.permute.xlu0 0
    %356 = vperm.xlu0 %355, %v99
    %v357 = vpop.permute.xlu0 %356
    %359 = vset.pattern.permute.xlu0 0
    %360 = vperm.xlu0 %359, %v100
    %v361 = vpop.permute.xlu0 %360
    %363 = vset.pattern.permute.xlu0 0
    %364 = vperm.xlu0 %363, %v101
    %v365 = vpop.permute.xlu0 %364
    %367 = vset.pattern.permute.xlu0 0
    %368 = vperm.xlu0 %367, %v102
    %v369 = vpop.permute.xlu0 %368
    %371 = vset.pattern.permute.xlu0 0
    %372 = vperm.xlu0 %371, %v103
    %v373 = vpop.permute.xlu0 %372
    %375 = vset.pattern.permute.xlu0 0
    %376 = vperm.xlu0 %375, %v104
    %v377 = vpop.permute.xlu0 %376
    %379 = vset.pattern.permute.xlu0 0
    %380 = vperm.xlu0 %379, %v105
    %v381 = vpop.permute.xlu0 %380
    %383 = vset.pattern.permute.xlu0 0
    %384 = vperm.xlu0 %383, %v106
    %v385 = vpop.permute.xlu0 %384
    %387 = vset.pattern.permute.xlu0 0
    %388 = vperm.xlu0 %387, %v107
    %v389 = vpop.permute.xlu0 %388
    %391 = vset.pattern.permute.xlu0 0
    %392 = vperm.xlu0 %391, %v108
    %v393 = vpop.permute.xlu0 %392
    %395 = vset.pattern.permute.xlu0 0
    %396 = vperm.xlu0 %395, %v109
    %v397 = vpop.permute.xlu0 %396
    %399 = vset.pattern.permute.xlu0 0
    %400 = vperm.xlu0 %399, %v110
    %v401 = vpop.permute.xlu0 %400
    %403 = vset.pattern.permute.xlu0 0
    %404 = vperm.xlu0 %403, %v111
    %v405 = vpop.permute.xlu0 %404
    %407 = vset.pattern.permute.xlu0 0
    %408 = vperm.xlu0 %407, %v112
    %v409 = vpop.permute.xlu0 %408
    %411 = vset.pattern.permute.xlu0 0
    %412 = vperm.xlu0 %411, %v113
    %v413 = vpop.permute.xlu0 %412
    %415 = vset.pattern.permute.xlu0 0
    %416 = vperm.xlu0 %415, %v114
    %v417 = vpop.permute.xlu0 %416
    %419 = vset.pattern.permute.xlu0 0
    %420 = vperm.xlu0 %419, %v115
    %v421 = vpop.permute.xlu0 %420
    %423 = vset.pattern.permute.xlu0 0
    %424 = vperm.xlu0 %423, %v116
    %v425 = vpop.permute.xlu0 %424
    %427 = vset.pattern.permute.xlu0 0
    %428 = vperm.xlu0 %427, %v117
    %v429 = vpop.permute.xlu0 %428
    %431 = vset.pattern.permute.xlu0 0
    %432 = vperm.xlu0 %431, %v118
    %v433 = vpop.permute.xlu0 %432
    %435 = vset.pattern.permute.xlu0 0
    %436 = vperm.xlu0 %435, %v119
    %v437 = vpop.permute.xlu0 %436
    %439 = vset.pattern.permute.xlu0 0
    %440 = vperm.xlu0 %439, %v120
    %v441 = vpop.permute.xlu0 %440
    %443 = vset.pattern.permute.xlu0 0
    %444 = vperm.xlu0 %443, %v121
    %v445 = vpop.permute.xlu0 %444
    %447 = vset.pattern.permute.xlu0 0
    %448 = vperm.xlu0 %447, %v122
    %v449 = vpop.permute.xlu0 %448
    %v452 = vlaneseq
    %v453 = vshrl.u32 %v452, 7
    %v454 = vsub.s32 0, %v453
    %v455 = vrot.slane %v123, %v454
    %v457 = vmax.f32 %v325, %v455
    %v458 = vmax.f32 %v329, %v455
    %v459 = vmax.f32 %v333, %v455
    %v460 = vmax.f32 %v337, %v455
    %v461 = vmax.f32 %v341, %v455
    %v462 = vmax.f32 %v345, %v455
    %v463 = vmax.f32 %v349, %v455
    %v464 = vmax.f32 %v353, %v455
    %v465 = vmax.f32 %v357, %v455
    %v466 = vmax.f32 %v361, %v455
    %v467 = vmax.f32 %v365, %v455
    %v468 = vmax.f32 %v369, %v455
    %v469 = vmax.f32 %v373, %v455
    %v470 = vmax.f32 %v377, %v455
    %v471 = vmax.f32 %v381, %v455
    %v472 = vmax.f32 %v385, %v455
    %v473 = vmax.f32 %v389, %v455
    %v474 = vmax.f32 %v393, %v455
    %v475 = vmax.f32 %v397, %v455
    %v476 = vmax.f32 %v401, %v455
    %v477 = vmax.f32 %v405, %v455
    %v478 = vmax.f32 %v409, %v455
    %v479 = vmax.f32 %v413, %v455
    %v480 = vmax.f32 %v417, %v455
    %v481 = vmax.f32 %v421, %v455
    %v482 = vmax.f32 %v425, %v455
    %v483 = vmax.f32 %v429, %v455
    %v484 = vmax.f32 %v433, %v455
    %v485 = vmax.f32 %v437, %v455
    %v486 = vmax.f32 %v441, %v455
    %v487 = vmax.f32 %v445, %v455
    %v488 = vmax.f32 %v449, %v455
    %v489 = vsub.f32 %v291, %v457
    %v490 = vsub.f32 %v292, %v458
    %v491 = vsub.f32 %v293, %v459
    %v492 = vsub.f32 %v294, %v460
    %v493 = vsub.f32 %v295, %v461
    %v494 = vsub.f32 %v296, %v462
    %v495 = vsub.f32 %v297, %v463
    %v496 = vsub.f32 %v298, %v464
    %v497 = vsub.f32 %v299, %v465
    %v498 = vsub.f32 %v300, %v466
    %v499 = vsub.f32 %v301, %v467
    %v500 = vsub.f32 %v302, %v468
    %v501 = vsub.f32 %v303, %v469
    %v502 = vsub.f32 %v304, %v470
    %v503 = vsub.f32 %v305, %v471
    %v504 = vsub.f32 %v306, %v472
    %v505 = vsub.f32 %v307, %v473
    %v506 = vsub.f32 %v308, %v474
    %v507 = vsub.f32 %v309, %v475
    %v508 = vsub.f32 %v310, %v476
    %v509 = vsub.f32 %v311, %v477
    %v510 = vsub.f32 %v312, %v478
    %v511 = vsub.f32 %v313, %v479
    %v512 = vsub.f32 %v314, %v480
    %v513 = vsub.f32 %v315, %v481
    %v514 = vsub.f32 %v316, %v482
    %v515 = vsub.f32 %v317, %v483
    %v516 = vsub.f32 %v318, %v484
    %v517 = vsub.f32 %v319, %v485
    %v518 = vsub.f32 %v320, %v486
    %v519 = vsub.f32 %v321, %v487
    %v520 = vsub.f32 %v322, %v488
    %v521 = vmax.f32 %v489, 0.0
    %v522 = vmax.f32 %v490, 0.0
    %v523 = vmax.f32 %v491, 0.0
    %v524 = vmax.f32 %v492, 0.0
    %v525 = vmax.f32 %v493, 0.0
    %v526 = vmax.f32 %v494, 0.0
    %v527 = vmax.f32 %v495, 0.0
    %v528 = vmax.f32 %v496, 0.0
    %v529 = vmax.f32 %v497, 0.0
    %v530 = vmax.f32 %v498, 0.0
    %v531 = vmax.f32 %v499, 0.0
    %v532 = vmax.f32 %v500, 0.0
    %v533 = vmax.f32 %v501, 0.0
    %v534 = vmax.f32 %v502, 0.0
    %v535 = vmax.f32 %v503, 0.0
    %v536 = vmax.f32 %v504, 0.0
    %v537 = vmax.f32 %v505, 0.0
    %v538 = vmax.f32 %v506, 0.0
    %v539 = vmax.f32 %v507, 0.0
    %v540 = vmax.f32 %v508, 0.0
    %v541 = vmax.f32 %v509, 0.0
    %v542 = vmax.f32 %v510, 0.0
    %v543 = vmax.f32 %v511, 0.0
    %v544 = vmax.f32 %v512, 0.0
    %v545 = vmax.f32 %v513, 0.0
    %v546 = vmax.f32 %v514, 0.0
    %v547 = vmax.f32 %v515, 0.0
    %v548 = vmax.f32 %v516, 0.0
    %v549 = vmax.f32 %v517, 0.0
    %v550 = vmax.f32 %v518, 0.0
    %v551 = vmax.f32 %v519, 0.0
    %v552 = vmax.f32 %v520, 0.0
    %553 = vset.pattern.permute.xlu0 2
    %554 = vperm.xlu0 %553, %v91
    %v555 = vpop.permute.xlu0 %554
    %557 = vset.pattern.permute.xlu0 2
    %558 = vperm.xlu0 %557, %v92
    %v559 = vpop.permute.xlu0 %558
    %561 = vset.pattern.permute.xlu0 2
    %562 = vperm.xlu0 %561, %v93
    %v563 = vpop.permute.xlu0 %562
    %565 = vset.pattern.permute.xlu0 2
    %566 = vperm.xlu0 %565, %v94
    %v567 = vpop.permute.xlu0 %566
    %569 = vset.pattern.permute.xlu0 2
    %570 = vperm.xlu0 %569, %v95
    %v571 = vpop.permute.xlu0 %570
    %573 = vset.pattern.permute.xlu0 2
    %574 = vperm.xlu0 %573, %v96
    %v575 = vpop.permute.xlu0 %574
    %577 = vset.pattern.permute.xlu0 2
    %578 = vperm.xlu0 %577, %v97
    %v579 = vpop.permute.xlu0 %578
    %581 = vset.pattern.permute.xlu0 2
    %582 = vperm.xlu0 %581, %v98
    %v583 = vpop.permute.xlu0 %582
    %585 = vset.pattern.permute.xlu0 2
    %586 = vperm.xlu0 %585, %v99
    %v587 = vpop.permute.xlu0 %586
    %589 = vset.pattern.permute.xlu0 2
    %590 = vperm.xlu0 %589, %v100
    %v591 = vpop.permute.xlu0 %590
    %593 = vset.pattern.permute.xlu0 2
    %594 = vperm.xlu0 %593, %v101
    %v595 = vpop.permute.xlu0 %594
    %597 = vset.pattern.permute.xlu0 2
    %598 = vperm.xlu0 %597, %v102
    %v599 = vpop.permute.xlu0 %598
    %601 = vset.pattern.permute.xlu0 2
    %602 = vperm.xlu0 %601, %v103
    %v603 = vpop.permute.xlu0 %602
    %605 = vset.pattern.permute.xlu0 2
    %606 = vperm.xlu0 %605, %v104
    %v607 = vpop.permute.xlu0 %606
    %609 = vset.pattern.permute.xlu0 2
    %610 = vperm.xlu0 %609, %v105
    %v611 = vpop.permute.xlu0 %610
    %613 = vset.pattern.permute.xlu0 2
    %614 = vperm.xlu0 %613, %v106
    %v615 = vpop.permute.xlu0 %614
    %617 = vset.pattern.permute.xlu0 2
    %618 = vperm.xlu0 %617, %v107
    %v619 = vpop.permute.xlu0 %618
    %621 = vset.pattern.permute.xlu0 2
    %622 = vperm.xlu0 %621, %v108
    %v623 = vpop.permute.xlu0 %622
    %625 = vset.pattern.permute.xlu0 2
    %626 = vperm.xlu0 %625, %v109
    %v627 = vpop.permute.xlu0 %626
    %629 = vset.pattern.permute.xlu0 2
    %630 = vperm.xlu0 %629, %v110
    %v631 = vpop.permute.xlu0 %630
    %633 = vset.pattern.permute.xlu0 2
    %634 = vperm.xlu0 %633, %v111
    %v635 = vpop.permute.xlu0 %634
    %637 = vset.pattern.permute.xlu0 2
    %638 = vperm.xlu0 %637, %v112
    %v639 = vpop.permute.xlu0 %638
    %641 = vset.pattern.permute.xlu0 2
    %642 = vperm.xlu0 %641, %v113
    %v643 = vpop.permute.xlu0 %642
    %645 = vset.pattern.permute.xlu0 2
    %646 = vperm.xlu0 %645, %v114
    %v647 = vpop.permute.xlu0 %646
    %649 = vset.pattern.permute.xlu0 2
    %650 = vperm.xlu0 %649, %v115
    %v651 = vpop.permute.xlu0 %650
    %653 = vset.pattern.permute.xlu0 2
    %654 = vperm.xlu0 %653, %v116
    %v655 = vpop.permute.xlu0 %654
    %657 = vset.pattern.permute.xlu0 2
    %658 = vperm.xlu0 %657, %v117
    %v659 = vpop.permute.xlu0 %658
    %661 = vset.pattern.permute.xlu0 2
    %662 = vperm.xlu0 %661, %v118
    %v663 = vpop.permute.xlu0 %662
    %665 = vset.pattern.permute.xlu0 2
    %666 = vperm.xlu0 %665, %v119
    %v667 = vpop.permute.xlu0 %666
    %669 = vset.pattern.permute.xlu0 2
    %670 = vperm.xlu0 %669, %v120
    %v671 = vpop.permute.xlu0 %670
    %673 = vset.pattern.permute.xlu0 2
    %674 = vperm.xlu0 %673, %v121
    %v675 = vpop.permute.xlu0 %674
    %677 = vset.pattern.permute.xlu0 2
    %678 = vperm.xlu0 %677, %v122
    %v679 = vpop.permute.xlu0 %678
    %v681 = vmul.f32 %v521, %v555
    %v682 = vmul.f32 %v522, %v559
    %v683 = vmul.f32 %v523, %v563
    %v684 = vmul.f32 %v524, %v567
    %v685 = vmul.f32 %v525, %v571
    %v686 = vmul.f32 %v526, %v575
    %v687 = vmul.f32 %v527, %v579
    %v688 = vmul.f32 %v528, %v583
    %v689 = vmul.f32 %v529, %v587
    %v690 = vmul.f32 %v530, %v591
    %v691 = vmul.f32 %v531, %v595
    %v692 = vmul.f32 %v532, %v599
    %v693 = vmul.f32 %v533, %v603
    %v694 = vmul.f32 %v534, %v607
    %v695 = vmul.f32 %v535, %v611
    %v696 = vmul.f32 %v536, %v615
    %v697 = vmul.f32 %v537, %v619
    %v698 = vmul.f32 %v538, %v623
    %v699 = vmul.f32 %v539, %v627
    %v700 = vmul.f32 %v540, %v631
    %v701 = vmul.f32 %v541, %v635
    %v702 = vmul.f32 %v542, %v639
    %v703 = vmul.f32 %v543, %v643
    %v704 = vmul.f32 %v544, %v647
    %v705 = vmul.f32 %v545, %v651
    %v706 = vmul.f32 %v546, %v655
    %v707 = vmul.f32 %v547, %v659
    %v708 = vmul.f32 %v548, %v663
    %v709 = vmul.f32 %v549, %v667
    %v710 = vmul.f32 %v550, %v671
    %v711 = vmul.f32 %v551, %v675
    %v712 = vmul.f32 %v552, %v679
    %713 = vst [vmem:[#allocation3] sm:$0xff] %v681
    %714 = vst [vmem:[#allocation3 + $0x10] sm:$0xff] %v682
    %715 = vst [vmem:[#allocation3 + $0x20] sm:$0xff] %v683
    %716 = vst [vmem:[#allocation3 + $0x30] sm:$0xff] %v684
    %717 = vst [vmem:[#allocation3 + $0x40] sm:$0xff] %v685
    %718 = vst [vmem:[#allocation3 + $0x50] sm:$0xff] %v686
    %719 = vst [vmem:[#allocation3 + $0x60] sm:$0xff] %v687
    %720 = vst [vmem:[#allocation3 + $0x70] sm:$0xff] %v688
    %721 = vst [vmem:[#allocation3 + $0x80] sm:$0xff] %v689
    %722 = vst [vmem:[#allocation3 + $0x90] sm:$0xff] %v690
    %723 = vst [vmem:[#allocation3 + $0xa0] sm:$0xff] %v691
    %724 = vst [vmem:[#allocation3 + $0xb0] sm:$0xff] %v692
    %725 = vst [vmem:[#allocation3 + $0xc0] sm:$0xff] %v693
    %726 = vst [vmem:[#allocation3 + $0xd0] sm:$0xff] %v694
    %727 = vst [vmem:[#allocation3 + $0xe0] sm:$0xff] %v695
    %728 = vst [vmem:[#allocation3 + $0xf0] sm:$0xff] %v696
    %729 = vst [vmem:[#allocation3 + $0x100] sm:$0xff] %v697
    %730 = vst [vmem:[#allocation3 + $0x110] sm:$0xff] %v698
    %731 = vst [vmem:[#allocation3 + $0x120] sm:$0xff] %v699
    %732 = vst [vmem:[#allocation3 + $0x130] sm:$0xff] %v700
    %733 = vst [vmem:[#allocation3 + $0x140] sm:$0xff] %v701
    %734 = vst [vmem:[#allocation3 + $0x150] sm:$0xff] %v702
    %735 = vst [vmem:[#allocation3 + $0x160] sm:$0xff] %v703
    %736 = vst [vmem:[#allocation3 + $0x170] sm:$0xff] %v704
    %737 = vst [vmem:[#allocation3 + $0x180] sm:$0xff] %v705
    %738 = vst [vmem:[#allocation3 + $0x190] sm:$0xff] %v706
    %739 = vst [vmem:[#allocation3 + $0x1a0] sm:$0xff] %v707
    %740 = vst [vmem:[#allocation3 + $0x1b0] sm:$0xff] %v708
    %741 = vst [vmem:[#allocation3 + $0x1c0] sm:$0xff] %v709
    %742 = vst [vmem:[#allocation3 + $0x1d0] sm:$0xff] %v710
    %743 = vst [vmem:[#allocation3 + $0x1e0] sm:$0xff] %v711
    %744 = vst [vmem:[#allocation3 + $0x1f0] sm:$0xff] %v712
    %745 = vset.pattern.permute.xlu0 3
    %746 = vperm.xlu0 %745, %v91
    %v747 = vpop.permute.xlu0 %746
    %749 = vset.pattern.permute.xlu0 3
    %750 = vperm.xlu0 %749, %v92
    %v751 = vpop.permute.xlu0 %750
    %753 = vset.pattern.permute.xlu0 3
    %754 = vperm.xlu0 %753, %v93
    %v755 = vpop.permute.xlu0 %754
    %757 = vset.pattern.permute.xlu0 3
    %758 = vperm.xlu0 %757, %v94
    %v759 = vpop.permute.xlu0 %758
    %761 = vset.pattern.permute.xlu0 3
    %762 = vperm.xlu0 %761, %v95
    %v763 = vpop.permute.xlu0 %762
    %765 = vset.pattern.permute.xlu0 3
    %766 = vperm.xlu0 %765, %v96
    %v767 = vpop.permute.xlu0 %766
    %769 = vset.pattern.permute.xlu0 3
    %770 = vperm.xlu0 %769, %v97
    %v771 = vpop.permute.xlu0 %770
    %773 = vset.pattern.permute.xlu0 3
    %774 = vperm.xlu0 %773, %v98
    %v775 = vpop.permute.xlu0 %774
    %777 = vset.pattern.permute.xlu0 3
    %778 = vperm.xlu0 %777, %v99
    %v779 = vpop.permute.xlu0 %778
    %781 = vset.pattern.permute.xlu0 3
    %782 = vperm.xlu0 %781, %v100
    %v783 = vpop.permute.xlu0 %782
    %785 = vset.pattern.permute.xlu0 3
    %786 = vperm.xlu0 %785, %v101
    %v787 = vpop.permute.xlu0 %786
    %789 = vset.pattern.permute.xlu0 3
    %790 = vperm.xlu0 %789, %v102
    %v791 = vpop.permute.xlu0 %790
    %793 = vset.pattern.permute.xlu0 3
    %794 = vperm.xlu0 %793, %v103
    %v795 = vpop.permute.xlu0 %794
    %797 = vset.pattern.permute.xlu0 3
    %798 = vperm.xlu0 %797, %v104
    %v799 = vpop.permute.xlu0 %798
    %801 = vset.pattern.permute.xlu0 3
    %802 = vperm.xlu0 %801, %v105
    %v803 = vpop.permute.xlu0 %802
    %805 = vset.pattern.permute.xlu0 3
    %806 = vperm.xlu0 %805, %v106
    %v807 = vpop.permute.xlu0 %806
    %809 = vset.pattern.permute.xlu0 3
    %810 = vperm.xlu0 %809, %v107
    %v811 = vpop.permute.xlu0 %810
    %813 = vset.pattern.permute.xlu0 3
    %814 = vperm.xlu0 %813, %v108
    %v815 = vpop.permute.xlu0 %814
    %817 = vset.pattern.permute.xlu0 3
    %818 = vperm.xlu0 %817, %v109
    %v819 = vpop.permute.xlu0 %818
    %821 = vset.pattern.permute.xlu0 3
    %822 = vperm.xlu0 %821, %v110
    %v823 = vpop.permute.xlu0 %822
    %825 = vset.pattern.permute.xlu0 3
    %826 = vperm.xlu0 %825, %v111
    %v827 = vpop.permute.xlu0 %826
    %829 = vset.pattern.permute.xlu0 3
    %830 = vperm.xlu0 %829, %v112
    %v831 = vpop.permute.xlu0 %830
    %833 = vset.pattern.permute.xlu0 3
    %834 = vperm.xlu0 %833, %v113
    %v835 = vpop.permute.xlu0 %834
    %837 = vset.pattern.permute.xlu0 3
    %838 = vperm.xlu0 %837, %v114
    %v839 = vpop.permute.xlu0 %838
    %841 = vset.pattern.permute.xlu0 3
    %842 = vperm.xlu0 %841, %v115
    %v843 = vpop.permute.xlu0 %842
    %845 = vset.pattern.permute.xlu0 3
    %846 = vperm.xlu0 %845, %v116
    %v847 = vpop.permute.xlu0 %846
    %849 = vset.pattern.permute.xlu0 3
    %850 = vperm.xlu0 %849, %v117
    %v851 = vpop.permute.xlu0 %850
    %853 = vset.pattern.permute.xlu0 3
    %854 = vperm.xlu0 %853, %v118
    %v855 = vpop.permute.xlu0 %854
    %857 = vset.pattern.permute.xlu0 3
    %858 = vperm.xlu0 %857, %v119
    %v859 = vpop.permute.xlu0 %858
    %861 = vset.pattern.permute.xlu0 3
    %862 = vperm.xlu0 %861, %v120
    %v863 = vpop.permute.xlu0 %862
    %865 = vset.pattern.permute.xlu0 3
    %866 = vperm.xlu0 %865, %v121
    %v867 = vpop.permute.xlu0 %866
    %869 = vset.pattern.permute.xlu0 3
    %870 = vperm.xlu0 %869, %v122
    %v871 = vpop.permute.xlu0 %870
    %v873 = vmul.f32 %v521, %v747
    %v874 = vmul.f32 %v522, %v751
    %v875 = vmul.f32 %v523, %v755
    %v876 = vmul.f32 %v524, %v759
    %v877 = vmul.f32 %v525, %v763
    %v878 = vmul.f32 %v526, %v767
    %v879 = vmul.f32 %v527, %v771
    %v880 = vmul.f32 %v528, %v775
    %v881 = vmul.f32 %v529, %v779
    %v882 = vmul.f32 %v530, %v783
    %v883 = vmul.f32 %v531, %v787
    %v884 = vmul.f32 %v532, %v791
    %v885 = vmul.f32 %v533, %v795
    %v886 = vmul.f32 %v534, %v799
    %v887 = vmul.f32 %v535, %v803
    %v888 = vmul.f32 %v536, %v807
    %v889 = vmul.f32 %v537, %v811
    %v890 = vmul.f32 %v538, %v815
    %v891 = vmul.f32 %v539, %v819
    %v892 = vmul.f32 %v540, %v823
    %v893 = vmul.f32 %v541, %v827
    %v894 = vmul.f32 %v542, %v831
    %v895 = vmul.f32 %v543, %v835
    %v896 = vmul.f32 %v544, %v839
    %v897 = vmul.f32 %v545, %v843
    %v898 = vmul.f32 %v546, %v847
    %v899 = vmul.f32 %v547, %v851
    %v900 = vmul.f32 %v548, %v855
    %v901 = vmul.f32 %v549, %v859
    %v902 = vmul.f32 %v550, %v863
    %v903 = vmul.f32 %v551, %v867
    %v904 = vmul.f32 %v552, %v871
    %905 = vst [vmem:[#allocation3 + $0x8] sm:$0xff] %v873
    %906 = vst [vmem:[#allocation3 + $0x18] sm:$0xff] %v874
    %907 = vst [vmem:[#allocation3 + $0x28] sm:$0xff] %v875
    %908 = vst [vmem:[#allocation3 + $0x38] sm:$0xff] %v876
    %909 = vst [vmem:[#allocation3 + $0x48] sm:$0xff] %v877
    %910 = vst [vmem:[#allocation3 + $0x58] sm:$0xff] %v878
    %911 = vst [vmem:[#allocation3 + $0x68] sm:$0xff] %v879
    %912 = vst [vmem:[#allocation3 + $0x78] sm:$0xff] %v880
    %913 = vst [vmem:[#allocation3 + $0x88] sm:$0xff] %v881
    %914 = vst [vmem:[#allocation3 + $0x98] sm:$0xff] %v882
    %915 = vst [vmem:[#allocation3 + $0xa8] sm:$0xff] %v883
    %916 = vst [vmem:[#allocation3 + $0xb8] sm:$0xff] %v884
    %917 = vst [vmem:[#allocation3 + $0xc8] sm:$0xff] %v885
    %918 = vst [vmem:[#allocation3 + $0xd8] sm:$0xff] %v886
    %919 = vst [vmem:[#allocation3 + $0xe8] sm:$0xff] %v887
    %920 = vst [vmem:[#allocation3 + $0xf8] sm:$0xff] %v888
    %921 = vst [vmem:[#allocation3 + $0x108] sm:$0xff] %v889
    %922 = vst [vmem:[#allocation3 + $0x118] sm:$0xff] %v890
    %923 = vst [vmem:[#allocation3 + $0x128] sm:$0xff] %v891
    %924 = vst [vmem:[#allocation3 + $0x138] sm:$0xff] %v892
    %925 = vst [vmem:[#allocation3 + $0x148] sm:$0xff] %v893
    %926 = vst [vmem:[#allocation3 + $0x158] sm:$0xff] %v894
    %927 = vst [vmem:[#allocation3 + $0x168] sm:$0xff] %v895
    %928 = vst [vmem:[#allocation3 + $0x178] sm:$0xff] %v896
    %929 = vst [vmem:[#allocation3 + $0x188] sm:$0xff] %v897
    %930 = vst [vmem:[#allocation3 + $0x198] sm:$0xff] %v898
    %931 = vst [vmem:[#allocation3 + $0x1a8] sm:$0xff] %v899
    %932 = vst [vmem:[#allocation3 + $0x1b8] sm:$0xff] %v900
    %933 = vst [vmem:[#allocation3 + $0x1c8] sm:$0xff] %v901
    %934 = vst [vmem:[#allocation3 + $0x1d8] sm:$0xff] %v902
    %935 = vst [vmem:[#allocation3 + $0x1e8] sm:$0xff] %v903
    %936 = vst [vmem:[#allocation3 + $0x1f8] sm:$0xff] %v904
    %v937 = vld [vmem:[#allocation2] sm:$0xff]
    %v938 = vld [vmem:[#allocation2 + $0x8] sm:$0xff]
    %v939 = vld [vmem:[#allocation2 + $0x10] sm:$0xff]
    %v940 = vld [vmem:[#allocation2 + $0x18] sm:$0xff]
    %v941 = vld [vmem:[#allocation3] sm:$0xff]
    %v942 = vld [vmem:[#allocation3 + $0x8] sm:$0xff]
    %v943 = vld [vmem:[#allocation3 + $0x10] sm:$0xff]
    %v944 = vld [vmem:[#allocation3 + $0x18] sm:$0xff]
    %v945 = vld [vmem:[#allocation3 + $0x20] sm:$0xff]
    %v946 = vld [vmem:[#allocation3 + $0x28] sm:$0xff]
    %v947 = vld [vmem:[#allocation3 + $0x30] sm:$0xff]
    %v948 = vld [vmem:[#allocation3 + $0x38] sm:$0xff]
    %v949 = vld [vmem:[#allocation3 + $0x40] sm:$0xff]
    %v950 = vld [vmem:[#allocation3 + $0x48] sm:$0xff]
    %v951 = vld [vmem:[#allocation3 + $0x50] sm:$0xff]
    %v952 = vld [vmem:[#allocation3 + $0x58] sm:$0xff]
    %v953 = vld [vmem:[#allocation3 + $0x60] sm:$0xff]
    %v954 = vld [vmem:[#allocation3 + $0x68] sm:$0xff]
    %v955 = vld [vmem:[#allocation3 + $0x70] sm:$0xff]
    %v956 = vld [vmem:[#allocation3 + $0x78] sm:$0xff]
    %v957 = vld [vmem:[#allocation3 + $0x80] sm:$0xff]
    %v958 = vld [vmem:[#allocation3 + $0x88] sm:$0xff]
    %v959 = vld [vmem:[#allocation3 + $0x90] sm:$0xff]
    %v960 = vld [vmem:[#allocation3 + $0x98] sm:$0xff]
    %v961 = vld [vmem:[#allocation3 + $0xa0] sm:$0xff]
    %v962 = vld [vmem:[#allocation3 + $0xa8] sm:$0xff]
    %v963 = vld [vmem:[#allocation3 + $0xb0] sm:$0xff]
    %v964 = vld [vmem:[#allocation3 + $0xb8] sm:$0xff]
    %v965 = vld [vmem:[#allocation3 + $0xc0] sm:$0xff]
    %v966 = vld [vmem:[#allocation3 + $0xc8] sm:$0xff]
    %v967 = vld [vmem:[#allocation3 + $0xd0] sm:$0xff]
    %v968 = vld [vmem:[#allocation3 + $0xd8] sm:$0xff]
    %v969 = vld [vmem:[#allocation3 + $0xe0] sm:$0xff]
    %v970 = vld [vmem:[#allocation3 + $0xe8] sm:$0xff]
    %v971 = vld [vmem:[#allocation3 + $0xf0] sm:$0xff]
    %v972 = vld [vmem:[#allocation3 + $0xf8] sm:$0xff]
    %v973 = vld [vmem:[#allocation3 + $0x100] sm:$0xff]
    %v974 = vld [vmem:[#allocation3 + $0x108] sm:$0xff]
    %v975 = vld [vmem:[#allocation3 + $0x110] sm:$0xff]
    %v976 = vld [vmem:[#allocation3 + $0x118] sm:$0xff]
    %v977 = vld [vmem:[#allocation3 + $0x120] sm:$0xff]
    %v978 = vld [vmem:[#allocation3 + $0x128] sm:$0xff]
    %v979 = vld [vmem:[#allocation3 + $0x130] sm:$0xff]
    %v980 = vld [vmem:[#allocation3 + $0x138] sm:$0xff]
    %v981 = vld [vmem:[#allocation3 + $0x140] sm:$0xff]
    %v982 = vld [vmem:[#allocation3 + $0x148] sm:$0xff]
    %v983 = vld [vmem:[#allocation3 + $0x150] sm:$0xff]
    %v984 = vld [vmem:[#allocation3 + $0x158] sm:$0xff]
    %v985 = vld [vmem:[#allocation3 + $0x160] sm:$0xff]
    %v986 = vld [vmem:[#allocation3 + $0x168] sm:$0xff]
    %v987 = vld [vmem:[#allocation3 + $0x170] sm:$0xff]
    %v988 = vld [vmem:[#allocation3 + $0x178] sm:$0xff]
    %v989 = vld [vmem:[#allocation3 + $0x180] sm:$0xff]
    %v990 = vld [vmem:[#allocation3 + $0x188] sm:$0xff]
    %v991 = vld [vmem:[#allocation3 + $0x190] sm:$0xff]
    %v992 = vld [vmem:[#allocation3 + $0x198] sm:$0xff]
    %v993 = vld [vmem:[#allocation3 + $0x1a0] sm:$0xff]
    %v994 = vld [vmem:[#allocation3 + $0x1a8] sm:$0xff]
    %v995 = vld [vmem:[#allocation3 + $0x1b0] sm:$0xff]
    %v996 = vld [vmem:[#allocation3 + $0x1b8] sm:$0xff]
    %v997 = vld [vmem:[#allocation3 + $0x1c0] sm:$0xff]
    %v998 = vld [vmem:[#allocation3 + $0x1c8] sm:$0xff]
    %v999 = vld [vmem:[#allocation3 + $0x1d0] sm:$0xff]
    %v1000 = vld [vmem:[#allocation3 + $0x1d8] sm:$0xff]
    %v1001 = vld [vmem:[#allocation3 + $0x1e0] sm:$0xff]
    %v1002 = vld [vmem:[#allocation3 + $0x1e8] sm:$0xff]
    %v1003 = vld [vmem:[#allocation3 + $0x1f0] sm:$0xff]
    %v1004 = vld [vmem:[#allocation3 + $0x1f8] sm:$0xff]
    %1005 = vmatprep.subr.mxu0 %v942
    %1006 = vmatpush1.msra.mxu0 %v941
    %1007 = vmatprep.subr.mxu0 %v944
    %1008 = vmatpush1.msra.mxu0 %v943
    %1009 = vmatprep.subr.mxu0 %v946
    %1010 = vmatpush1.msra.mxu0 %v945
    %1011 = vmatprep.subr.mxu0 %v948
    %1012 = vmatpush1.msra.mxu0 %v947
    %1013 = vmatprep.subr.mxu0 %v950
    %1014 = vmatpush1.msra.mxu0 %v949
    %1015 = vmatprep.subr.mxu0 %v952
    %1016 = vmatpush1.msra.mxu0 %v951
    %1017 = vmatprep.subr.mxu0 %v954
    %1018 = vmatpush1.msra.mxu0 %v953
    %1019 = vmatprep.subr.mxu0 %v956
    %1020 = vmatpush1.msra.mxu0 %v955
    %1021 = vmatprep.subr.mxu0 %v958
    %1022 = vmatpush1.msra.mxu0 %v957
    %1023 = vmatprep.subr.mxu0 %v960
    %1024 = vmatpush1.msra.mxu0 %v959
    %1025 = vmatprep.subr.mxu0 %v962
    %1026 = vmatpush1.msra.mxu0 %v961
    %1027 = vmatprep.subr.mxu0 %v964
    %1028 = vmatpush1.msra.mxu0 %v963
    %1029 = vmatprep.subr.mxu0 %v966
    %1030 = vmatpush1.msra.mxu0 %v965
    %1031 = vmatprep.subr.mxu0 %v968
    %1032 = vmatpush1.msra.mxu0 %v967
    %1033 = vmatprep.subr.mxu0 %v970
    %1034 = vmatpush1.msra.mxu0 %v969
    %1035 = vmatprep.subr.mxu0 %v972
    %1036 = vmatpush1.msra.mxu0 %v971
    %1037 = vmatprep.subr.mxu0 %v974
    %1038 = vmatpush1.msra.mxu0 %v973
    %1039 = vmatprep.subr.mxu0 %v976
    %1040 = vmatpush1.msra.mxu0 %v975
    %1041 = vmatprep.subr.mxu0 %v978
    %1042 = vmatpush1.msra.mxu0 %v977
    %1043 = vmatprep.subr.mxu0 %v980
    %1044 = vmatpush1.msra.mxu0 %v979
    %1045 = vmatprep.subr.mxu0 %v982
    %1046 = vmatpush1.msra.mxu0 %v981
    %1047 = vmatprep.subr.mxu0 %v984
    %1048 = vmatpush1.msra.mxu0 %v983
    %1049 = vmatprep.subr.mxu0 %v986
    %1050 = vmatpush1.msra.mxu0 %v985
    %1051 = vmatprep.subr.mxu0 %v988
    %1052 = vmatpush1.msra.mxu0 %v987
    %1053 = vmatprep.subr.mxu0 %v990
    %1054 = vmatpush1.msra.mxu0 %v989
    %1055 = vmatprep.subr.mxu0 %v992
    %1056 = vmatpush1.msra.mxu0 %v991
    %1057 = vmatprep.subr.mxu0 %v994
    %1058 = vmatpush1.msra.mxu0 %v993
    %1059 = vmatprep.subr.mxu0 %v996
    %1060 = vmatpush1.msra.mxu0 %v995
    %1061 = vmatprep.subr.mxu0 %v998
    %1062 = vmatpush1.msra.mxu0 %v997
    %1063 = vmatprep.subr.mxu0 %v1000
    %1064 = vmatpush1.msra.mxu0 %v999
    %1065 = vmatprep.subr.mxu0 %v1002
    %1066 = vmatpush1.msra.mxu0 %v1001
    %1067 = vmatprep.subr.mxu0 %v1004
    %1068 = vmatpush1.msra.mxu0 %v1003
    %1069 = vmatprep.mubr.f32.mxu0 %v88
    %1070 = vmatmul.mubr.f32.gmra.mrb[0].mxu0 %v87
    %v1071 = vpop.f32.mrb[0].mxu0
    %v1072 = vadd.f32 0.0, %v1071
    %v1073 = vpop.f32.mrb[0].mxu0
    %v1074 = vadd.f32 0.0, %v1073
    %1075 = vmatprep.mubr.f32.mxu0 %v90
    %1076 = vmatmul.mubr.f32.gmra.mrb[0].mxu0 %v89
    %v1077 = vpop.f32.mrb[0].mxu0
    %v1078 = vadd.f32 0.0, %v1077
    %v1079 = vpop.f32.mrb[0].mxu0
    %v1080 = vadd.f32 0.0, %v1079
    %1081 = vdwg.mxu0
    %v1082 = vadd.f32 %v937, %v1072
    %v1083 = vadd.f32 %v938, %v1074
    %v1084 = vadd.f32 %v939, %v1078
    %v1085 = vadd.f32 %v940, %v1080
    %1086 = vst [vmem:[#allocation2] sm:$0xff] %v1082
    %1087 = vst [vmem:[#allocation2 + $0x8] sm:$0xff] %v1083
    %1088 = vst [vmem:[#allocation2 + $0x10] sm:$0xff] %v1084
    %1089 = vst [vmem:[#allocation2 + $0x18] sm:$0xff] %v1085
    // Predicated region
    $region22: #{tpu_custom_call.1} parent=1 // pred_check
      %p1090 = pneg %p18
    $region23: #{tpu_custom_call.1} parent=1 // pred_check_branch
      %1092 = sbr.rel (%p1090) target = $region25
    $region24: #{tpu_custom_call.1} parent=1 // pred_region
      %v1093 = vld [vmem:[#allocation2] sm:$0xff]
      %v1094 = vld [vmem:[#allocation2 + $0x8] sm:$0xff]
      %v1095 = vld [vmem:[#allocation2 + $0x10] sm:$0xff]
      %v1096 = vld [vmem:[#allocation2 + $0x18] sm:$0xff]
      %v1097 = vand.u32 2147483647, %v1093
      %v1098 = vand.u32 2147483647, %v1095
      %v1099 = vand.u32 2147483647, %v1094
      %v1100 = vand.u32 2147483647, %v1096
      %v1101 = vmax.f32 %v1097, %v1099
      %v1102 = vmax.f32 %v1098, %v1100
      %1103 = vst [vmem:[#allocation4] sm:$0xff] %v1101
      %1104 = vst [vmem:[#allocation4 + $0x8] sm:$0xff] %v1102
    $region25: #{tpu_custom_call.1} parent=1 // pred_fallthru
      _
    // Predicated region
    $region26: #{tpu_custom_call.1} parent=1 // pred_check
      _
    $region27: #{tpu_custom_call.1} parent=1 // pred_check_branch
      %1106 = sbr.rel (0) target = $region29
    $region28: #{tpu_custom_call.1} parent=1 // pred_region
      %s1108 = ssub.s32 256, 256
      %1109 = vsyncadd [#allocation5], %s1108
      %s1110 = sshll.u32 [#allocation4], 4
      %s1111 = int_to_ptr.vmem [resolvable:$true] %s1110
      %1116 = dma.vmem_to_hbm [thread:$0]  %s1111, 256, %s4, [#allocation5], 128, 128, 8
    $region29: #{tpu_custom_call.1} parent=1 // pred_fallthru
      _
    // Predicated region
    $region30: #{tpu_custom_call.1} parent=1 // pred_check
      _
    $region31: #{tpu_custom_call.1} parent=1 // pred_check_branch
      %1118 = sbr.rel (0) target = $region33
    $region32: #{tpu_custom_call.1} parent=1 // pred_region
      %1119 = dma.done [#allocation5], 256
    $region33: #{tpu_custom_call.1} parent=1 // pred_fallthru
      _
    %1120 = vsyncpa [#allocation5], 1

</llo_original>
